<compile_context>
chip_gen: v5e
topology: v5e:2x2
jax: 0.10.0
libtpu: 0.0.40
codegen_flags: <defaults>
</compile_context>

<pallas_src>
import jax
import jax.numpy as jnp
from jax.experimental import pallas as pl
from jax.experimental.pallas import tpu as pltpu


_INV_SQRT2 = 0.7071067811865476


def _cmlp_kernel(x_ref, w1t_ref, b1_ref, w2t_ref, b2_ref, o_ref, acc_ref):
    # x_ref:   (Cin,  tm)    pixel tile of one image (lanes = pixels)
    # w1t_ref: (tc_h, Cin)   chunk of fc1 weight, transposed
    # b1_ref:  (tc_h, 1)
    # w2t_ref: (Cout, tc_h)  chunk of fc2 weight, transposed
    # b2_ref:  (Cout, 1)
    # o_ref:   (Cout, tm)
    # acc_ref: (Cout, tm) f32 accumulator across hidden-dim chunks
    k = pl.program_id(2)

    @pl.when(k == 0)
    def _():
        acc_ref[...] = jnp.zeros_like(acc_ref)

    # fc1 (1x1 conv) on this hidden chunk; native-dtype operands, f32 accumulate.
    h = jnp.dot(w1t_ref[...], x_ref[...], preferred_element_type=jnp.float32)
    h = h + b1_ref[...].astype(jnp.float32)

    # Exact (erf-based) GELU to match PyTorch nn.GELU default; f32 math.
    h = 0.5 * h * (1.0 + jax.lax.erf(h * _INV_SQRT2))

    # fc2 partial contribution of this hidden chunk.
    acc_ref[...] += jnp.dot(w2t_ref[...], h, preferred_element_type=jnp.float32)

    @pl.when(k == pl.num_programs(2) - 1)
    def _():
        o_ref[...] = (acc_ref[...]
                      + b2_ref[...].astype(jnp.float32)).astype(o_ref.dtype)


def _round_up(a, b):
    return pl.cdiv(a, b) * b


def cmlp_forward(x_nchw, w1, b1, w2, b2, *, tm=512, h_chunk=512,
                 vmem_limit_bytes=32 * 1024 * 1024):
    """CMlp forward. x_nchw: (N, Cin, H, W); w1: (Cin, Chid); b1: (Chid,);
    w2: (Chid, Cout); b2: (Cout,). Returns (N, Cout, H, W)."""
    N, Cin, H, W = x_nchw.shape
    Chid = w1.shape[1]
    Cout = w2.shape[1]
    HW = H * W

    # Channels-first: keep NCHW, only merge the spatial dims (no transpose,
    # no extra HBM pass).
    x_flat = x_nchw.reshape(N, Cin, HW)

    # Pixel tile: large, multiple of 128 lanes, clamped to the padded image.
    tm_eff = min(tm, _round_up(HW, 128))
    tm_eff = max(128, (tm_eff // 128) * 128)
    HW_pad = _round_up(HW, tm_eff)
    if HW_pad != HW:
        x_flat = jnp.pad(x_flat, ((0, 0), (0, 0), (0, HW_pad - HW)))

    # Hidden-dim chunking bounds the live fc1 activation (tc_h, tm) in VMEM.
    if Chid <= h_chunk:
        tc_h = Chid
        Chid_pad = Chid
    else:
        tc_h = h_chunk                       # multiple of 128
        Chid_pad = _round_up(Chid, tc_h)

    # Pre-transpose the tiny weight matrices once in the wrapper.
    w1t = jnp.transpose(w1)                  # (Chid, Cin)
    w2t = jnp.transpose(w2)                  # (Cout, Chid)
    b1c = b1.reshape(Chid, 1)
    b2c = b2.reshape(Cout, 1)
    if Chid_pad != Chid:
        w1t = jnp.pad(w1t, ((0, Chid_pad - Chid), (0, 0)))
        b1c = jnp.pad(b1c, ((0, Chid_pad - Chid), (0, 0)))
        w2t = jnp.pad(w2t, ((0, 0), (0, Chid_pad - Chid)))

    n_m = HW_pad // tm_eff
    n_k = Chid_pad // tc_h
    grid = (N, n_m, n_k)                     # reduction axis (hidden) last

    itemsize = x_nchw.dtype.itemsize
    cost = pl.CostEstimate(
        flops=int(2 * N * HW * (Cin * Chid + Chid * Cout)),
        transcendentals=int(N * HW * Chid),
        bytes_accessed=int(x_nchw.size * itemsize
                           + N * HW * Cout * itemsize
                           + w1.size * w1.dtype.itemsize
                           + w2.size * w2.dtype.itemsize
                           + b1.size * b1.dtype.itemsize
                           + b2.size * b2.dtype.itemsize),
    )

    out = pl.pallas_call(
        _cmlp_kernel,
        out_shape=jax.ShapeDtypeStruct((N, Cout, HW_pad), x_nchw.dtype),
        grid_spec=pltpu.PrefetchScalarGridSpec(
            num_scalar_prefetch=0,
            grid=grid,
            in_specs=[
                pl.BlockSpec((None, Cin, tm_eff), lambda n, i, k: (n, 0, i)),
                pl.BlockSpec((tc_h, Cin), lambda n, i, k: (k, 0)),
                pl.BlockSpec((tc_h, 1), lambda n, i, k: (k, 0)),
                pl.BlockSpec((Cout, tc_h), lambda n, i, k: (0, k)),
                pl.BlockSpec((Cout, 1), lambda n, i, k: (0, 0)),
            ],
            out_specs=pl.BlockSpec((None, Cout, tm_eff),
                                   lambda n, i, k: (n, 0, i)),
            scratch_shapes=[pltpu.VMEM((Cout, tm_eff), jnp.float32)],
        ),
        compiler_params=pltpu.CompilerParams(
            dimension_semantics=("parallel", "parallel", "arbitrary"),
            vmem_limit_bytes=vmem_limit_bytes,
        ),
        cost_estimate=cost,
    )(x_flat, w1t, b1c, w2t, b2c)

    # Drop spatial padding; output is already NCHW.
    return out[:, :, :HW].reshape(N, Cout, H, W)


if __name__ == "__main__":
    key = jax.random.PRNGKey(0)
    k_x, k_w1, k_b1, k_w2, k_b2 = jax.random.split(key, 5)

    N, Cin, H, W = 2, 4, 16, 16
    Chid = 32          # hidden_features
    Cout = Cin         # out_features defaults to in_features

    x = jax.random.normal(k_x, (N, Cin, H, W), dtype=jnp.float32)

    # Deterministic synthetic parameters (1x1 Conv2d weights as matrices).
    w1 = jax.random.normal(k_w1, (Cin, Chid), dtype=jnp.float32) * 0.05
    b1 = jax.random.normal(k_b1, (Chid,), dtype=jnp.float32) * 0.01
    w2 = jax.random.normal(k_w2, (Chid, Cout), dtype=jnp.float32) * 0.05
    b2 = jax.random.normal(k_b2, (Cout,), dtype=jnp.float32) * 0.01

    out = cmlp_forward(x, w1, b1, w2, b2)
    jax.block_until_ready(out)

    # Reference in plain JAX (same channels-first math).
    x_flat = x.reshape(N, Cin, H * W)
    h_ref = jnp.einsum('cd,ncm->ndm', w1, x_flat) + b1[None, :, None]
    h_ref = 0.5 * h_ref * (1.0 + jax.lax.erf(h_ref * 0.7071067811865476))
    y_ref = jnp.einsum('dc,ndm->ncm', w2, h_ref) + b2[None, :, None]
    ref = y_ref.reshape(N, Cout, H, W)
    assert jnp.allclose(out, ref, atol=5e-5, rtol=5e-5)

    # TODO(synk): nn.Dropout with p=0.0 is an identity; no dropout RNG implemented.
    print("KERNEL_OK")
</pallas_src>

<mosaic_0001>
module attributes {stable_mosaic.version = 11 : i64} {
  func.func @_cmlp_kernel(%arg0: i32, %arg1: i32, %arg2: i32, %arg3: memref<1x4x256xf32, #tpu.memory_space<vmem>>, %arg4: memref<32x4xf32, #tpu.memory_space<vmem>>, %arg5: memref<32x1xf32, #tpu.memory_space<vmem>>, %arg6: memref<4x32xf32, #tpu.memory_space<vmem>>, %arg7: memref<4x1xf32, #tpu.memory_space<vmem>>, %arg8: memref<1x4x256xf32, #tpu.memory_space<vmem>>, %arg9: memref<4x256xf32, #tpu.memory_space<vmem>>) attributes {dimension_semantics = [#tpu.dimension_semantics<parallel>, #tpu.dimension_semantics<parallel>, #tpu.dimension_semantics<arbitrary>], iteration_bounds = array<i64: 2, 1, 1>, scalar_prefetch = 0 : i64, scratch_operands = 1 : i64, tpu.core_type = #tpu.core_type<tc>, window_params = [{transform_indices = @transform_0, window_bounds = array<i64: 1, 4, 256>}, {transform_indices = @transform_1, window_bounds = array<i64: 32, 4>}, {transform_indices = @transform_2, window_bounds = array<i64: 32, 1>}, {transform_indices = @transform_3, window_bounds = array<i64: 4, 32>}, {pipeline_mode = #tpu.pipeline_mode<synchronous>, transform_indices = @transform_4, window_bounds = array<i64: 4, 1>}, {transform_indices = @transform_5, window_bounds = array<i64: 1, 4, 256>}]} {
    %c0_i32 = arith.constant 0 : i32
    %0 = arith.cmpi eq, %arg2, %c0_i32 : i32
    %1 = arith.extui %0 : i1 to i32
    %c0_i32_0 = arith.constant 0 : i32
    %2 = arith.cmpi ne, %1, %c0_i32_0 : i32
    scf.if %2 {
      %cst_19 = arith.constant 0.000000e+00 : f32
      %26 = vector.broadcast %cst_19 : f32 to vector<4x256xf32>
      %c0_20 = arith.constant 0 : index
      %c0_21 = arith.constant 0 : index
      %27 = vector.load %arg9[%c0_20, %c0_21] : memref<4x256xf32, #tpu.memory_space<vmem>>, vector<4x256xf32>
      tpu.vector_store %arg9[%c0_20, %c0_21], %26 {strides = array<i32>} : memref<4x256xf32, #tpu.memory_space<vmem>>, vector<4x256xf32>,
    } else {
    }
    %c0 = arith.constant 0 : index
    %c0_1 = arith.constant 0 : index
    %3 = vector.load %arg4[%c0, %c0_1] : memref<32x4xf32, #tpu.memory_space<vmem>>, vector<32x4xf32>
    %c0_2 = arith.constant 0 : index
    %c0_3 = arith.constant 0 : index
    %c0_4 = arith.constant 0 : index
    %4 = vector.load %arg3[%c0_2, %c0_3, %c0_4] : memref<1x4x256xf32, #tpu.memory_space<vmem>>, vector<1x4x256xf32>
    %5 = vector.shape_cast %4 : vector<1x4x256xf32> to vector<4x256xf32>
    %cst = arith.constant dense<0.000000e+00> : vector<32x256xf32>
    %6 = tpu.matmul %3, %5, %cst {dimension_numbers = #tpu.dot_dimension_numbers<[1], [0], [0], [1], [0, 0, 1, 1], [], []>} : vector<32x4xf32>, vector<4x256xf32>, vector<32x256xf32> -> vector<32x256xf32>
    %c0_5 = arith.constant 0 : index
    %c0_6 = arith.constant 0 : index
    %7 = vector.load %arg5[%c0_5, %c0_6] : memref<32x1xf32, #tpu.memory_space<vmem>>, vector<32x1xf32>
    %8 = vector.broadcast %7 : vector<32x1xf32> to vector<32x256xf32>
    %9 = arith.addf %6, %8 : vector<32x256xf32>
    %cst_7 = arith.constant 5.000000e-01 : f32
    %10 = vector.broadcast %cst_7 : f32 to vector<32x256xf32>
    %11 = arith.mulf %10, %9 : vector<32x256xf32>
    %cst_8 = arith.constant 0.707106769 : f32
    %12 = vector.broadcast %cst_8 : f32 to vector<32x256xf32>
    %13 = arith.mulf %9, %12 : vector<32x256xf32>
    %14 = math.erf %13 : vector<32x256xf32>
    %cst_9 = arith.constant 1.000000e+00 : f32
    %15 = vector.broadcast %cst_9 : f32 to vector<32x256xf32>
    %16 = arith.addf %15, %14 : vector<32x256xf32>
    %17 = arith.mulf %11, %16 : vector<32x256xf32>
    %c0_10 = arith.constant 0 : index
    %c0_11 = arith.constant 0 : index
    %18 = vector.load %arg9[%c0_10, %c0_11] : memref<4x256xf32, #tpu.memory_space<vmem>>, vector<4x256xf32>
    %c0_12 = arith.constant 0 : index
    %c0_13 = arith.constant 0 : index
    %19 = vector.load %arg6[%c0_12, %c0_13] : memref<4x32xf32, #tpu.memory_space<vmem>>, vector<4x32xf32>
    %cst_14 = arith.constant dense<0.000000e+00> : vector<4x256xf32>
    %20 = tpu.matmul %19, %17, %cst_14 {dimension_numbers = #tpu.dot_dimension_numbers<[1], [0], [0], [1], [0, 0, 1, 1], [], []>} : vector<4x32xf32>, vector<32x256xf32>, vector<4x256xf32> -> vector<4x256xf32>
    %21 = arith.addf %18, %20 : vector<4x256xf32>
    %c0_15 = arith.constant 0 : index
    %c0_16 = arith.constant 0 : index
    %22 = vector.load %arg9[%c0_15, %c0_16] : memref<4x256xf32, #tpu.memory_space<vmem>>, vector<4x256xf32>
    tpu.vector_store %arg9[%c0_15, %c0_16], %21 {strides = array<i32>} : memref<4x256xf32, #tpu.memory_space<vmem>>, vector<4x256xf32>,
    %c0_i32_17 = arith.constant 0 : i32
    %23 = arith.cmpi eq, %arg2, %c0_i32_17 : i32
    %24 = arith.extui %23 : i1 to i32
    %c0_i32_18 = arith.constant 0 : i32
    %25 = arith.cmpi ne, %24, %c0_i32_18 : i32
    scf.if %25 {
      %c0_19 = arith.constant 0 : index
      %c0_20 = arith.constant 0 : index
      %26 = vector.load %arg9[%c0_19, %c0_20] : memref<4x256xf32, #tpu.memory_space<vmem>>, vector<4x256xf32>
      %c0_21 = arith.constant 0 : index
      %c0_22 = arith.constant 0 : index
      %27 = vector.load %arg7[%c0_21, %c0_22] : memref<4x1xf32, #tpu.memory_space<vmem>>, vector<4x1xf32>
      %28 = vector.broadcast %27 : vector<4x1xf32> to vector<4x256xf32>
      %29 = arith.addf %26, %28 : vector<4x256xf32>
      %c0_23 = arith.constant 0 : index
      %c0_24 = arith.constant 0 : index
      %c0_25 = arith.constant 0 : index
      %30 = vector.load %arg8[%c0_23, %c0_24, %c0_25] : memref<1x4x256xf32, #tpu.memory_space<vmem>>, vector<1x4x256xf32>
      %31 = vector.shape_cast %30 : vector<1x4x256xf32> to vector<4x256xf32>
      %32 = vector.shape_cast %29 : vector<4x256xf32> to vector<1x4x256xf32>
      tpu.vector_store %arg8[%c0_23, %c0_24, %c0_25], %32 {strides = array<i32>} : memref<1x4x256xf32, #tpu.memory_space<vmem>>, vector<1x4x256xf32>,
    } else {
    }
    return
  }
  func.func @transform_0(%arg0: i32, %arg1: i32, %arg2: i32) -> (i32, i32, i32) {
    %c0_i32 = arith.constant 0 : i32
    %c0_i32_0 = arith.constant 0 : i32
    return %arg0, %c0_i32, %arg1 : i32, i32, i32
  }
  func.func @transform_1(%arg0: i32, %arg1: i32, %arg2: i32) -> (i32, i32) {
    %c0_i32 = arith.constant 0 : i32
    %c0_i32_0 = arith.constant 0 : i32
    return %arg2, %c0_i32 : i32, i32
  }
  func.func @transform_2(%arg0: i32, %arg1: i32, %arg2: i32) -> (i32, i32) {
    %c0_i32 = arith.constant 0 : i32
    %c0_i32_0 = arith.constant 0 : i32
    return %arg2, %c0_i32 : i32, i32
  }
  func.func @transform_3(%arg0: i32, %arg1: i32, %arg2: i32) -> (i32, i32) {
    %c0_i32 = arith.constant 0 : i32
    %c0_i32_0 = arith.constant 0 : i32
    return %c0_i32, %arg2 : i32, i32
  }
  func.func @transform_4(%arg0: i32, %arg1: i32, %arg2: i32) -> (i32, i32) {
    %c0_i32 = arith.constant 0 : i32
    %c0_i32_0 = arith.constant 0 : i32
    %c0_i32_1 = arith.constant 0 : i32
    return %c0_i32, %c0_i32_0 : i32, i32
  }
  func.func @transform_5(%arg0: i32, %arg1: i32, %arg2: i32) -> (i32, i32, i32) {
    %c0_i32 = arith.constant 0 : i32
    %c0_i32_0 = arith.constant 0 : i32
    return %arg0, %c0_i32, %arg1 : i32, i32, i32
  }
}

</mosaic_0001>

<llo_original>
// kernel: tpu_custom_call.1
$region0: #{tpu_custom_call.1}
  #allocation0 [shape = 'u32[]', space=smem, size = 0x4, offset = 0x4, fixed_abs, tag = 'smem constant byte address 0x4 - core index']
  #allocation1 [shape = 'u32[72,128]{1,0:T(1,128)}', space=vmem, size = 0x9000, scoped, tag = 'internal scratch']
  #allocation2 [shape = 'f32[4,256]{1,0:T(4,128)}', space=vmem, size = 0x1000, scoped, tag = 'scratch operand']
  %s0 = inlined_call_operand.vmem [shape: f32[2,4,256], index: 0, kind: input, shape index: {}]
  %s1 = inlined_call_operand.vmem [shape: f32[32,4], index: 1, kind: input, shape index: {}]
  %s2 = inlined_call_operand.vmem [shape: f32[32,1], index: 2, kind: input, shape index: {}]
  %s3 = inlined_call_operand.vmem [shape: f32[4,32], index: 3, kind: input, shape index: {}]
  %s4 = inlined_call_operand.vmem [shape: f32[4,1], index: 4, kind: input, shape index: {}]
  %s5 = inlined_call_operand.hbm [shape: f32[2,4,256], index: 5, kind: output, shape index: {}]
  %s6 = sld [smem:[#allocation0]]
  $region61: #{tpu_custom_call.1} parent=0
    _
  %s8 = ssub.s32 1, %s6
  %s9 = scalar_select 0, %s8, %s6
  $region1: #{tpu_custom_call.1} parent=0
    #allocation3 [shape = 'u8[8192]{0}', space=vmem, size = 0x2000, scoped, tag = 'output window, operand 0']
    #allocation4 [shape = 's32[2]{0}', space=sflag, size = 0x8, scoped, tag = 'scoped memory for tpu_custom_call.1']
    %10 = vsyncpa [#allocation4], 0
    %s11 = scalar_lea.sflag [#allocation4], 1
    %12 = vsyncpa %s11, 0
    loop: start=0, step=1, limit=4
    $region2: #{tpu_custom_call.1} parent=1 // loop_pre_header
      _
    $region3: #{tpu_custom_call.1} parent=1 // loop_header
      %s14 = sphi 0, %s18
      %p15 = scmp.ge.s32.totalorder %s14, 4
      %s21 = sphi 0, %s40
      %s22 = sphi 0, %s36
      %s23 = sphi 0, %s32
      %s24 = sphi 0, %s21
      %s25 = sphi 0, %s22
      %s26 = sphi 0, %s23
      %s27 = sphi 0, %s24
      %s28 = sphi 0, %s25
      %s29 = sphi 0, %s26
      %s45 = sphi 0, %s47
      %s48 = sphi 0, %s45
      %s49 = sphi 0, %s48
      %s65 = sphi 0, %s49
      %s71 = sphi 0, %s73
      %s74 = sphi 0, %s71
      %s75 = sphi 0, %s74
      %s91 = sphi 0, %s75
      %s97 = sphi 0, %s99
      %s100 = sphi 0, %s97
      %s101 = sphi 0, %s100
      %s117 = sphi 0, %s101
      %s123 = sphi 0, %s125
      %s126 = sphi 0, %s123
      %s127 = sphi 0, %s126
      %s143 = sphi 0, %s127
      %s147 = sphi 0, %s147
      %s149 = sphi 0, %s147
      %s150 = sphi 0, %s149
      %s164 = sphi 0, %s150
      %s172 = sphi 0, %s174
      %s175 = sphi 0, %s172
      %s176 = sphi 0, %s175
      %s192 = sphi 0, %s176
    $region4: #{tpu_custom_call.1} parent=1 // loop_header_branch
      %17 = sbr.rel (%p15) target = $region8
    $region5: #{tpu_custom_call.1} parent=1 // loop_body
      %s19 = ssub.s32 %s14, 1
      %s20 = ssub.s32 %s14, 2
      %s30 = sadd.s32 1, %s23
      %p31 = scmp.ge.s32.totalorder %s30, 1
      %s32 = scalar_select %p31, 0, %s30
      %s33 = sadd.s32 1, %s22
      %s34 = scalar_select %p31, %s33, %s22
      %p35 = scmp.ge.s32.totalorder %s34, 1
      %s36 = scalar_select %p35, 0, %s34
      %s37 = sadd.s32 1, %s21
      %s38 = scalar_select %p35, %s37, %s21
      %p39 = scmp.ge.s32.totalorder %s38, 2
      %s40 = scalar_select %p39, 0, %s38
      %s41 = ssub.s32 %s21, %s40
      %s42 = ssub.s32 %s22, %s36
      %s43 = sor.u32 %s41, %s42
      %p44 = scmp.eq.s32.totalorder %s43, 0
      %s46 = sadd.s32 %s45, 1
      %s47 = scalar_select %p44, %s45, %s46
      %p50 = pneg %p44
      %p51 = scmp.eq.s32.totalorder %s14, 1
      %p52 = por %p50, %p51
      %p53 = scmp.ne.s32.totalorder %s45, %s48
      %p54 = scmp.eq.s32.totalorder %s14, 0
      %p55 = por %p53, %p54
      %p56 = scmp.ne.s32.totalorder %s45, %s48
      %p57 = scmp.eq.s32.totalorder %s19, 1
      %p58 = por %p56, %p57
      %p59 = scmp.ne.s32.totalorder %s48, %s49
      %p60 = scmp.eq.s32.totalorder %s19, 0
      %p61 = por %p59, %p60
      %p62 = scmp.ne.s32.totalorder %s48, %s49
      %p63 = scmp.eq.s32.totalorder %s20, 1
      %p64 = por %p62, %p63
      %p66 = scmp.ne.s32.totalorder %s49, %s65
      %p67 = scmp.eq.s32.totalorder %s20, 0
      %p68 = por %p66, %p67
      %s69 = ssub.s32 %s23, %s32
      %p70 = scmp.eq.s32.totalorder %s69, 0
      %s72 = sadd.s32 %s71, 1
      %s73 = scalar_select %p70, %s71, %s72
      %p76 = pneg %p70
      %p77 = scmp.eq.s32.totalorder %s14, 1
      %p78 = por %p76, %p77
      %p79 = scmp.ne.s32.totalorder %s71, %s74
      %p80 = scmp.eq.s32.totalorder %s14, 0
      %p81 = por %p79, %p80
      %p82 = scmp.ne.s32.totalorder %s71, %s74
      %p83 = scmp.eq.s32.totalorder %s19, 1
      %p84 = por %p82, %p83
      %p85 = scmp.ne.s32.totalorder %s74, %s75
      %p86 = scmp.eq.s32.totalorder %s19, 0
      %p87 = por %p85, %p86
      %p88 = scmp.ne.s32.totalorder %s74, %s75
      %p89 = scmp.eq.s32.totalorder %s20, 1
      %p90 = por %p88, %p89
      %p92 = scmp.ne.s32.totalorder %s75, %s91
      %p93 = scmp.eq.s32.totalorder %s20, 0
      %p94 = por %p92, %p93
      %s95 = ssub.s32 %s23, %s32
      %p96 = scmp.eq.s32.totalorder %s95, 0
      %s98 = sadd.s32 %s97, 1
      %s99 = scalar_select %p96, %s97, %s98
      %p102 = pneg %p96
      %p103 = scmp.eq.s32.totalorder %s14, 1
      %p104 = por %p102, %p103
      %p105 = scmp.ne.s32.totalorder %s97, %s100
      %p106 = scmp.eq.s32.totalorder %s14, 0
      %p107 = por %p105, %p106
      %p108 = scmp.ne.s32.totalorder %s97, %s100
      %p109 = scmp.eq.s32.totalorder %s19, 1
      %p110 = por %p108, %p109
      %p111 = scmp.ne.s32.totalorder %s100, %s101
      %p112 = scmp.eq.s32.totalorder %s19, 0
      %p113 = por %p111, %p112
      %p114 = scmp.ne.s32.totalorder %s100, %s101
      %p115 = scmp.eq.s32.totalorder %s20, 1
      %p116 = por %p114, %p115
      %p118 = scmp.ne.s32.totalorder %s101, %s117
      %p119 = scmp.eq.s32.totalorder %s20, 0
      %p120 = por %p118, %p119
      %s121 = ssub.s32 %s23, %s32
      %p122 = scmp.eq.s32.totalorder %s121, 0
      %s124 = sadd.s32 %s123, 1
      %s125 = scalar_select %p122, %s123, %s124
      %p128 = pneg %p122
      %p129 = scmp.eq.s32.totalorder %s14, 1
      %p130 = por %p128, %p129
      %p131 = scmp.ne.s32.totalorder %s123, %s126
      %p132 = scmp.eq.s32.totalorder %s14, 0
      %p133 = por %p131, %p132
      %p134 = scmp.ne.s32.totalorder %s123, %s126
      %p135 = scmp.eq.s32.totalorder %s19, 1
      %p136 = por %p134, %p135
      %p137 = scmp.ne.s32.totalorder %s126, %s127
      %p138 = scmp.eq.s32.totalorder %s19, 0
      %p139 = por %p137, %p138
      %p140 = scmp.ne.s32.totalorder %s126, %s127
      %p141 = scmp.eq.s32.totalorder %s20, 1
      %p142 = por %p140, %p141
      %p144 = scmp.ne.s32.totalorder %s127, %s143
      %p145 = scmp.eq.s32.totalorder %s20, 0
      %p146 = por %p144, %p145
      %s148 = sadd.s32 %s147, 1
      %p151 = scmp.eq.s32.totalorder %s14, 1
      %p152 = scmp.ne.s32.totalorder %s147, %s149
      %p153 = scmp.eq.s32.totalorder %s14, 0
      %p154 = por %p152, %p153
      %p155 = scmp.ne.s32.totalorder %s147, %s149
      %p156 = scmp.eq.s32.totalorder %s19, 1
      %p157 = por %p155, %p156
      %p158 = scmp.ne.s32.totalorder %s149, %s150
      %p159 = scmp.eq.s32.totalorder %s19, 0
      %p160 = por %p158, %p159
      %p161 = scmp.ne.s32.totalorder %s149, %s150
      %p162 = scmp.eq.s32.totalorder %s20, 1
      %p163 = por %p161, %p162
      %p165 = scmp.ne.s32.totalorder %s150, %s164
      %p166 = scmp.eq.s32.totalorder %s20, 0
      %p167 = por %p165, %p166
      %s168 = ssub.s32 %s21, %s40
      %s169 = ssub.s32 %s22, %s36
      %s170 = sor.u32 %s168, %s169
      %p171 = scmp.eq.s32.totalorder %s170, 0
      %s173 = sadd.s32 %s172, 1
      %s174 = scalar_select %p171, %s172, %s173
      %p177 = pneg %p171
      %p178 = scmp.eq.s32.totalorder %s14, 1
      %p179 = por %p177, %p178
      %p180 = scmp.ne.s32.totalorder %s172, %s175
      %p181 = scmp.eq.s32.totalorder %s14, 0
      %p182 = por %p180, %p181
      %p183 = scmp.ne.s32.totalorder %s172, %s175
      %p184 = scmp.eq.s32.totalorder %s19, 1
      %p185 = por %p183, %p184
      %p186 = scmp.ne.s32.totalorder %s175, %s176
      %p187 = scmp.eq.s32.totalorder %s19, 0
      %p188 = por %p186, %p187
      %p189 = scmp.ne.s32.totalorder %s175, %s176
      %p190 = scmp.eq.s32.totalorder %s20, 1
      %p191 = por %p189, %p190
      %p193 = scmp.ne.s32.totalorder %s176, %s192
      %p194 = scmp.eq.s32.totalorder %s20, 0
      %p195 = por %p193, %p194
      %p196 = scmp.le.s32.totalorder 1, %s14
      %p197 = scmp.lt.s32.totalorder %s14, 3
      %p198 = pnand %p196, %p197
      %p199 = pneg %p198
      // Predicated region
      $region9: #{tpu_custom_call.1} parent=5 // pred_check
        _
      $region10: #{tpu_custom_call.1} parent=5 // pred_check_branch
        %201 = sbr.rel (%p198) target = $region12
      $region11: #{tpu_custom_call.1} parent=5 // pred_region
        %s202 = ssub.s32 %s14, 1
        // Predicated region
        $region13: #{tpu_custom_call.1} parent=11 // pred_check
          %p203 = pneg %p87
        $region14: #{tpu_custom_call.1} parent=11 // pred_check_branch
          %205 = sbr.rel (%p203) target = $region16
        $region15: #{tpu_custom_call.1} parent=11 // pred_region
          %s206 = smul.u32 4, %s26
          %p207 = scmp.lt.s32.totalorder %s206, 3
          %s208 = scalar_select %p207, %s206, 3
          %s209 = smul.addr %s208, 8
          %s210 = scalar_lea.vmem %s1, %s209
          %s211 = smul.u32 4, %s26
        $region16: #{tpu_custom_call.1} parent=11 // pred_fallthru
          _
        // Predicated region
        $region17: #{tpu_custom_call.1} parent=11 // pred_check
          %p212 = pneg %p113
        $region18: #{tpu_custom_call.1} parent=11 // pred_check_branch
          %214 = sbr.rel (%p212) target = $region20
        $region19: #{tpu_custom_call.1} parent=11 // pred_region
          %s215 = smul.u32 4, %s26
          %p216 = scmp.lt.s32.totalorder %s215, 3
          %s217 = scalar_select %p216, %s215, 3
          %s218 = smul.addr %s217, 8
          %s219 = scalar_lea.vmem %s2, %s218
          %s220 = smul.u32 4, %s26
        $region20: #{tpu_custom_call.1} parent=11 // pred_fallthru
          _
        // Predicated region
        $region21: #{tpu_custom_call.1} parent=11 // pred_check
          %p221 = pneg %p139
        $region22: #{tpu_custom_call.1} parent=11 // pred_check_branch
          %223 = sbr.rel (%p221) target = $region24
        $region23: #{tpu_custom_call.1} parent=11 // pred_region
          %p224 = scmp.lt.s32.totalorder %s26, 0
          %s225 = scalar_select %p224, %s26, 0
          %s226 = smul.addr %s225, 4
          %s227 = scalar_lea.vmem %s3, %s226
        $region24: #{tpu_custom_call.1} parent=11 // pred_fallthru
          _
        // Predicated region
        $region25: #{tpu_custom_call.1} parent=11 // pred_check
          %p228 = pneg %p160
        $region26: #{tpu_custom_call.1} parent=11 // pred_check_branch
          %230 = sbr.rel (%p228) target = $region28
        $region27: #{tpu_custom_call.1} parent=11 // pred_region
          _
        $region28: #{tpu_custom_call.1} parent=11 // pred_fallthru
          _
      $region12: #{tpu_custom_call.1} parent=5 // pred_fallthru
        _
      %p231 = scmp.lt.s32.totalorder %s14, 2
      // Predicated region
      $region29: #{tpu_custom_call.1} parent=5 // pred_check
        %p232 = pneg %p231
      $region30: #{tpu_custom_call.1} parent=5 // pred_check_branch
        %234 = sbr.rel (%p232) target = $region32
      $region31: #{tpu_custom_call.1} parent=5 // pred_region
        // Predicated region
        $region33: #{tpu_custom_call.1} parent=31 // pred_check
          %p235 = pneg %p55
        $region34: #{tpu_custom_call.1} parent=31 // pred_check_branch
          %237 = sbr.rel (%p235) target = $region36
        $region35: #{tpu_custom_call.1} parent=31 // pred_region
          %s238 = smul.u32 2, %s22
          %p239 = scmp.lt.s32.totalorder %s21, 1
          %s240 = scalar_select %p239, %s21, 1
          %p241 = scmp.lt.s32.totalorder %s238, 1
          %s242 = scalar_select %p241, %s238, 1
          %s243 = smul.addr %s240, 2
          %s244 = sadd.s32 %s242, %s243
          %s245 = smul.addr %s244, 4
          %s246 = scalar_lea.vmem %s0, %s245
          %s247 = smul.u32 2, %s22
        $region36: #{tpu_custom_call.1} parent=31 // pred_fallthru
          _
      $region32: #{tpu_custom_call.1} parent=5 // pred_fallthru
        _
      %p248 = scmp.le.s32.totalorder 1, %s14
      %p249 = scmp.lt.s32.totalorder %s14, 3
      %p250 = pnand %p248, %p249
      %p251 = pneg %p250
      // Predicated region
      $region37: #{tpu_custom_call.1} parent=5 // pred_check
        _
      $region38: #{tpu_custom_call.1} parent=5 // pred_check_branch
        %253 = sbr.rel (%p250) target = $region40
      $region39: #{tpu_custom_call.1} parent=5 // pred_region
        %s254 = ssub.s32 %s14, 1
        %s255 = smul.u32 2, %s25
        %p256 = scmp.lt.s32.totalorder %s24, 1
        %s257 = scalar_select %p256, %s24, 1
        %p258 = scmp.lt.s32.totalorder %s255, 1
        %s259 = scalar_select %p258, %s255, 1
        %s260 = smul.addr %s257, 2
        %s261 = sadd.s32 %s259, %s260
        %s262 = smul.addr %s261, 4
        %s263 = scalar_lea.vmem %s0, %s262
        %p264 = pneg %p61
        %p265 = pneg %p58
        %s266 = smul.u32 4, %s26
        %p267 = scmp.lt.s32.totalorder %s266, 3
        %s268 = scalar_select %p267, %s266, 3
        %s269 = smul.addr %s268, 8
        %s270 = scalar_lea.vmem %s1, %s269
        %p271 = pneg %p87
        %p272 = pneg %p84
        %s273 = smul.u32 4, %s26
        %p274 = scmp.lt.s32.totalorder %s273, 3
        %s275 = scalar_select %p274, %s273, 3
        %s276 = smul.addr %s275, 8
        %s277 = scalar_lea.vmem %s2, %s276
        %p278 = pneg %p113
        %p279 = pneg %p110
        %p280 = scmp.lt.s32.totalorder %s26, 0
        %s281 = scalar_select %p280, %s26, 0
        %s282 = smul.addr %s281, 4
        %s283 = scalar_lea.vmem %s3, %s282
        %p284 = pneg %p139
        %p285 = pneg %p136
        %p286 = pneg %p160
        %p287 = pneg %p157
        %p288 = pneg %p188
        %p289 = pneg %p185
        %s290 = sand.u32 %s175, 1
        %s291 = scalar_lea.sflag [#allocation4], %s290
        %s292 = sand.u32 %s175, 1
        %s293 = smul.addr %s292, 8
        %s294 = scalar_lea.vmem [#allocation3], %s293
        %s295 = smul.u32 2, %s25
        %p296 = scmp.lt.s32.totalorder %s24, 1
        %s297 = scalar_select %p296, %s24, 1
        %p298 = scmp.lt.s32.totalorder %s295, 1
        %s299 = scalar_select %p298, %s295, 1
        %s300 = smul.addr %s297, 2
        %s301 = sadd.s32 %s299, %s300
        %s302 = smul.addr %s301, 4
        %s303 = scalar_lea.vmem %s0, %s302
        %s304 = smul.u32 2, %s25
        %s305 = smul.u32 4, %s26
        %p306 = scmp.lt.s32.totalorder %s305, 3
        %s307 = scalar_select %p306, %s305, 3
        %s308 = smul.addr %s307, 8
        %s309 = scalar_lea.vmem %s1, %s308
        %s310 = smul.u32 4, %s26
        %s311 = smul.u32 4, %s26
        %p312 = scmp.lt.s32.totalorder %s311, 3
        %s313 = scalar_select %p312, %s311, 3
        %s314 = smul.addr %s313, 8
        %s315 = scalar_lea.vmem %s2, %s314
        %s316 = smul.u32 4, %s26
        %p317 = scmp.lt.s32.totalorder %s26, 0
        %s318 = scalar_select %p317, %s26, 0
        %s319 = smul.addr %s318, 4
        %s320 = scalar_lea.vmem %s3, %s319
        %s321 = smul.u32 2, %s25
        %p322 = scmp.eq.s32.totalorder %s26, 0
        // Predicated region
        $region41: #{tpu_custom_call.1} parent=39 // pred_check
          %p323 = pneg %p322
        $region42: #{tpu_custom_call.1} parent=39 // pred_check_branch
          %325 = sbr.rel (%p323) target = $region44
        $region43: #{tpu_custom_call.1} parent=39 // pred_region
          %326 = vst [vmem:[#allocation2] sm:$0xff] 0.0
        $region44: #{tpu_custom_call.1} parent=39 // pred_fallthru
          _
        %v327 = vld [vmem:[%s309] sm:$0xff]
        %v328 = vld [vmem:[%s309 + $0x8] sm:$0xff]
        %v329 = vld [vmem:[%s309 + $0x10] sm:$0xff]
        %v330 = vld [vmem:[%s309 + $0x18] sm:$0xff]
        %v331 = vld [vmem:[%s303] sm:$0xff]
        %v332 = vld [vmem:[%s315] sm:$0xff]
        %v333 = vld [vmem:[%s315 + $0x8] sm:$0xff]
        %v334 = vld [vmem:[%s315 + $0x10] sm:$0xff]
        %v335 = vld [vmem:[%s315 + $0x18] sm:$0xff]
        %337 = vset.pattern.permute.xlu0 0
        %338 = vperm.xlu0 %337, %v332
        %v339 = vpop.permute.xlu0 %338
        %342 = vset.pattern.permute.xlu0 0
        %343 = vperm.xlu0 %342, %v333
        %v344 = vpop.permute.xlu0 %343
        %347 = vset.pattern.permute.xlu0 0
        %348 = vperm.xlu0 %347, %v334
        %v349 = vpop.permute.xlu0 %348
        %352 = vset.pattern.permute.xlu0 0
        %353 = vperm.xlu0 %352, %v335
        %v354 = vpop.permute.xlu0 %353
        %357 = vst [vmem:[#allocation1] ss:$2 sm:$0xff] %v331
        %v358 = vld.sshfl [vmem:[#allocation1] sm:$0xff pattern:$0x75316420]
        %v359 = vld.sshfl [vmem:[#allocation1 + $0x8] sm:$0xff pattern:$0x75316420]
        %vm360 = vcmask 31744
        %v362 = vsel %vm360, %v327, 0
        %v365 = vsel %vm360, %v328, 0
        %v368 = vsel %vm360, %v329, 0
        %v371 = vsel %vm360, %v330, 0
        %vm373 = vcmask 1043456
        %v374 = vsel %vm373, %v358, 0
        %v376 = vsel %vm373, %v359, 0
        %378 = vmatpush.msra.mxu0 0.0
        %379 = vmatpush.msra.mxu0 0.0
        %380 = vmatpush.msra.mxu0 0.0
        %381 = vmatpush.msra.mxu0 0.0
        %382 = vmatpush.msra.mxu0 0.0
        %383 = vmatpush.msra.mxu0 0.0
        %384 = vmatpush.msra.mxu0 0.0
        %385 = vmatpush.msra.mxu0 0.0
        %386 = vmatpush.msra.mxu0 0.0
        %387 = vmatpush.msra.mxu0 0.0
        %388 = vmatpush.msra.mxu0 0.0
        %389 = vmatpush.msra.mxu0 0.0
        %390 = vmatpush.msra.mxu0 0.0
        %391 = vmatpush.msra.mxu0 0.0
        %392 = vmatpush.msra.mxu0 0.0
        %393 = vmatpush.msra.mxu0 %v374
        %394 = vmatmul.f32.gmra.mxu0 %v362
        %v395 = vpop.f32.mrf.mxu0
        %v396 = vadd.f32 %v339, %v395
        %397 = vmatmul.f32.gmra.mxu0 %v365
        %v398 = vpop.f32.mrf.mxu0
        %v399 = vadd.f32 %v344, %v398
        %400 = vmatmul.f32.gmra.mxu0 %v368
        %v401 = vpop.f32.mrf.mxu0
        %v402 = vadd.f32 %v349, %v401
        %403 = vmatmul.f32.gmra.mxu0 %v371
        %v404 = vpop.f32.mrf.mxu0
        %v405 = vadd.f32 %v354, %v404
        %406 = vdwg.mxu0
        %407 = vmatpush.msra.mxu0 0.0
        %408 = vmatpush.msra.mxu0 0.0
        %409 = vmatpush.msra.mxu0 0.0
        %410 = vmatpush.msra.mxu0 0.0
        %411 = vmatpush.msra.mxu0 0.0
        %412 = vmatpush.msra.mxu0 0.0
        %413 = vmatpush.msra.mxu0 0.0
        %414 = vmatpush.msra.mxu0 0.0
        %415 = vmatpush.msra.mxu0 0.0
        %416 = vmatpush.msra.mxu0 0.0
        %417 = vmatpush.msra.mxu0 0.0
        %418 = vmatpush.msra.mxu0 0.0
        %419 = vmatpush.msra.mxu0 0.0
        %420 = vmatpush.msra.mxu0 0.0
        %421 = vmatpush.msra.mxu0 0.0
        %422 = vmatpush.msra.mxu0 %v376
        %423 = vmatmul.f32.gmra.mxu0 %v362
        %v424 = vpop.f32.mrf.mxu0
        %v425 = vadd.f32 %v339, %v424
        %426 = vmatmul.f32.gmra.mxu0 %v365
        %v427 = vpop.f32.mrf.mxu0
        %v428 = vadd.f32 %v344, %v427
        %429 = vmatmul.f32.gmra.mxu0 %v368
        %v430 = vpop.f32.mrf.mxu0
        %v431 = vadd.f32 %v349, %v430
        %432 = vmatmul.f32.gmra.mxu0 %v371
        %v433 = vpop.f32.mrf.mxu0
        %v434 = vadd.f32 %v354, %v433
        %435 = vdwg.mxu0
        %v436 = vmul.f32 %v396, 0.5
        %v437 = vmul.f32 %v425, 0.5
        %v438 = vmul.f32 %v399, 0.5
        %v439 = vmul.f32 %v428, 0.5
        %v440 = vmul.f32 %v402, 0.5
        %v441 = vmul.f32 %v431, 0.5
        %v442 = vmul.f32 %v405, 0.5
        %v443 = vmul.f32 %v434, 0.5
        %v444 = vmul.f32 %v396, 0.70710677
        %v445 = vmul.f32 %v425, 0.70710677
        %v446 = vmul.f32 %v399, 0.70710677
        %v447 = vmul.f32 %v428, 0.70710677
        %v448 = vmul.f32 %v402, 0.70710677
        %v449 = vmul.f32 %v431, 0.70710677
        %v450 = vmul.f32 %v405, 0.70710677
        %v451 = vmul.f32 %v434, 0.70710677
        %v452 = vmul.f32 %v444, %v444
        %v453 = vmin.f32 16.0, %v452
        %v454 = vmul.f32 %v453, 2.1237322e-06
        %v455 = vadd.f32 %v454, 0.00028619796
        %v456 = vmul.f32 %v453, %v455
        %v457 = vadd.f32 %v456, 0.0036580483
        %v458 = vmul.f32 %v453, %v457
        %v459 = vadd.f32 %v458, 0.05243302
        %v460 = vmul.f32 %v453, %v459
        %v461 = vadd.f32 %v460, 0.18741608
        %v462 = vmul.f32 %v453, %v461
        %v463 = vadd.f32 %v462, 1.1283791
        %v464 = vmul.f32 %v444, %v463
        %v465 = vmul.f32 %v453, 3.8918573e-05
        %v466 = vadd.f32 %v465, 0.001143296
        %v467 = vmul.f32 %v453, %v466
        %v468 = vadd.f32 %v467, 0.014752088
        %v469 = vmul.f32 %v453, %v468
        %v470 = vadd.f32 %v469, 0.112945676
        %v471 = vmul.f32 %v453, %v470
        %v472 = vadd.f32 %v471, 0.4994258
        %v473 = vmul.f32 %v453, %v472
        %v474 = vadd.f32 %v473, 1.0
        %v475 = vrcp.pop %v474
        %v476 = vmul.f32 %v474, %v475
        %v477 = vsub.f32 1.0, %v476
        %v478 = vmul.f32 %v475, %v477
        %v479 = vadd.f32 %v475, %v478
        %vm480 = vweird.f32 %v474
        %vm481 = vweird.f32 %v475
        %vm482 = vmor %vm480, %vm481
        %v483 = vsel %vm482, %v475, %v479
        %v484 = vand.u32 2147483647, %v474
        %vm485 = vcmp.eq.f32.partialorder %v484, 8.507059e+37
        %v486 = vand.u32 %v474, 2147483648
        %v487 = vor.u32 1.1754944e-38, %v486
        %v488 = vsel %vm485, %v487, %v483
        %v489 = vmul.f32 %v464, %v488
        %v490 = vmin.f32 %v489, 1.0
        %v491 = vmax.f32 %v490, -1.0
        %v492 = vmul.f32 %v445, %v445
        %v493 = vmin.f32 16.0, %v492
        %v494 = vmul.f32 %v493, 2.1237322e-06
        %v495 = vadd.f32 %v494, 0.00028619796
        %v496 = vmul.f32 %v493, %v495
        %v497 = vadd.f32 %v496, 0.0036580483
        %v498 = vmul.f32 %v493, %v497
        %v499 = vadd.f32 %v498, 0.05243302
        %v500 = vmul.f32 %v493, %v499
        %v501 = vadd.f32 %v500, 0.18741608
        %v502 = vmul.f32 %v493, %v501
        %v503 = vadd.f32 %v502, 1.1283791
        %v504 = vmul.f32 %v445, %v503
        %v505 = vmul.f32 %v493, 3.8918573e-05
        %v506 = vadd.f32 %v505, 0.001143296
        %v507 = vmul.f32 %v493, %v506
        %v508 = vadd.f32 %v507, 0.014752088
        %v509 = vmul.f32 %v493, %v508
        %v510 = vadd.f32 %v509, 0.112945676
        %v511 = vmul.f32 %v493, %v510
        %v512 = vadd.f32 %v511, 0.4994258
        %v513 = vmul.f32 %v493, %v512
        %v514 = vadd.f32 %v513, 1.0
        %v515 = vrcp.pop %v514
        %v516 = vmul.f32 %v514, %v515
        %v517 = vsub.f32 1.0, %v516
        %v518 = vmul.f32 %v515, %v517
        %v519 = vadd.f32 %v515, %v518
        %vm520 = vweird.f32 %v514
        %vm521 = vweird.f32 %v515
        %vm522 = vmor %vm520, %vm521
        %v523 = vsel %vm522, %v515, %v519
        %v524 = vand.u32 2147483647, %v514
        %vm525 = vcmp.eq.f32.partialorder %v524, 8.507059e+37
        %v526 = vand.u32 %v514, 2147483648
        %v527 = vor.u32 1.1754944e-38, %v526
        %v528 = vsel %vm525, %v527, %v523
        %v529 = vmul.f32 %v504, %v528
        %v530 = vmin.f32 %v529, 1.0
        %v531 = vmax.f32 %v530, -1.0
        %v532 = vmul.f32 %v446, %v446
        %v533 = vmin.f32 16.0, %v532
        %v534 = vmul.f32 %v533, 2.1237322e-06
        %v535 = vadd.f32 %v534, 0.00028619796
        %v536 = vmul.f32 %v533, %v535
        %v537 = vadd.f32 %v536, 0.0036580483
        %v538 = vmul.f32 %v533, %v537
        %v539 = vadd.f32 %v538, 0.05243302
        %v540 = vmul.f32 %v533, %v539
        %v541 = vadd.f32 %v540, 0.18741608
        %v542 = vmul.f32 %v533, %v541
        %v543 = vadd.f32 %v542, 1.1283791
        %v544 = vmul.f32 %v446, %v543
        %v545 = vmul.f32 %v533, 3.8918573e-05
        %v546 = vadd.f32 %v545, 0.001143296
        %v547 = vmul.f32 %v533, %v546
        %v548 = vadd.f32 %v547, 0.014752088
        %v549 = vmul.f32 %v533, %v548
        %v550 = vadd.f32 %v549, 0.112945676
        %v551 = vmul.f32 %v533, %v550
        %v552 = vadd.f32 %v551, 0.4994258
        %v553 = vmul.f32 %v533, %v552
        %v554 = vadd.f32 %v553, 1.0
        %v555 = vrcp.pop %v554
        %v556 = vmul.f32 %v554, %v555
        %v557 = vsub.f32 1.0, %v556
        %v558 = vmul.f32 %v555, %v557
        %v559 = vadd.f32 %v555, %v558
        %vm560 = vweird.f32 %v554
        %vm561 = vweird.f32 %v555
        %vm562 = vmor %vm560, %vm561
        %v563 = vsel %vm562, %v555, %v559
        %v564 = vand.u32 2147483647, %v554
        %vm565 = vcmp.eq.f32.partialorder %v564, 8.507059e+37
        %v566 = vand.u32 %v554, 2147483648
        %v567 = vor.u32 1.1754944e-38, %v566
        %v568 = vsel %vm565, %v567, %v563
        %v569 = vmul.f32 %v544, %v568
        %v570 = vmin.f32 %v569, 1.0
        %v571 = vmax.f32 %v570, -1.0
        %v572 = vmul.f32 %v447, %v447
        %v573 = vmin.f32 16.0, %v572
        %v574 = vmul.f32 %v573, 2.1237322e-06
        %v575 = vadd.f32 %v574, 0.00028619796
        %v576 = vmul.f32 %v573, %v575
        %v577 = vadd.f32 %v576, 0.0036580483
        %v578 = vmul.f32 %v573, %v577
        %v579 = vadd.f32 %v578, 0.05243302
        %v580 = vmul.f32 %v573, %v579
        %v581 = vadd.f32 %v580, 0.18741608
        %v582 = vmul.f32 %v573, %v581
        %v583 = vadd.f32 %v582, 1.1283791
        %v584 = vmul.f32 %v447, %v583
        %v585 = vmul.f32 %v573, 3.8918573e-05
        %v586 = vadd.f32 %v585, 0.001143296
        %v587 = vmul.f32 %v573, %v586
        %v588 = vadd.f32 %v587, 0.014752088
        %v589 = vmul.f32 %v573, %v588
        %v590 = vadd.f32 %v589, 0.112945676
        %v591 = vmul.f32 %v573, %v590
        %v592 = vadd.f32 %v591, 0.4994258
        %v593 = vmul.f32 %v573, %v592
        %v594 = vadd.f32 %v593, 1.0
        %v595 = vrcp.pop %v594
        %v596 = vmul.f32 %v594, %v595
        %v597 = vsub.f32 1.0, %v596
        %v598 = vmul.f32 %v595, %v597
        %v599 = vadd.f32 %v595, %v598
        %vm600 = vweird.f32 %v594
        %vm601 = vweird.f32 %v595
        %vm602 = vmor %vm600, %vm601
        %v603 = vsel %vm602, %v595, %v599
        %v604 = vand.u32 2147483647, %v594
        %vm605 = vcmp.eq.f32.partialorder %v604, 8.507059e+37
        %v606 = vand.u32 %v594, 2147483648
        %v607 = vor.u32 1.1754944e-38, %v606
        %v608 = vsel %vm605, %v607, %v603
        %v609 = vmul.f32 %v584, %v608
        %v610 = vmin.f32 %v609, 1.0
        %v611 = vmax.f32 %v610, -1.0
        %v612 = vmul.f32 %v448, %v448
        %v613 = vmin.f32 16.0, %v612
        %v614 = vmul.f32 %v613, 2.1237322e-06
        %v615 = vadd.f32 %v614, 0.00028619796
        %v616 = vmul.f32 %v613, %v615
        %v617 = vadd.f32 %v616, 0.0036580483
        %v618 = vmul.f32 %v613, %v617
        %v619 = vadd.f32 %v618, 0.05243302
        %v620 = vmul.f32 %v613, %v619
        %v621 = vadd.f32 %v620, 0.18741608
        %v622 = vmul.f32 %v613, %v621
        %v623 = vadd.f32 %v622, 1.1283791
        %v624 = vmul.f32 %v448, %v623
        %v625 = vmul.f32 %v613, 3.8918573e-05
        %v626 = vadd.f32 %v625, 0.001143296
        %v627 = vmul.f32 %v613, %v626
        %v628 = vadd.f32 %v627, 0.014752088
        %v629 = vmul.f32 %v613, %v628
        %v630 = vadd.f32 %v629, 0.112945676
        %v631 = vmul.f32 %v613, %v630
        %v632 = vadd.f32 %v631, 0.4994258
        %v633 = vmul.f32 %v613, %v632
        %v634 = vadd.f32 %v633, 1.0
        %v635 = vrcp.pop %v634
        %v636 = vmul.f32 %v634, %v635
        %v637 = vsub.f32 1.0, %v636
        %v638 = vmul.f32 %v635, %v637
        %v639 = vadd.f32 %v635, %v638
        %vm640 = vweird.f32 %v634
        %vm641 = vweird.f32 %v635
        %vm642 = vmor %vm640, %vm641
        %v643 = vsel %vm642, %v635, %v639
        %v644 = vand.u32 2147483647, %v634
        %vm645 = vcmp.eq.f32.partialorder %v644, 8.507059e+37
        %v646 = vand.u32 %v634, 2147483648
        %v647 = vor.u32 1.1754944e-38, %v646
        %v648 = vsel %vm645, %v647, %v643
        %v649 = vmul.f32 %v624, %v648
        %v650 = vmin.f32 %v649, 1.0
        %v651 = vmax.f32 %v650, -1.0
        %v652 = vmul.f32 %v449, %v449
        %v653 = vmin.f32 16.0, %v652
        %v654 = vmul.f32 %v653, 2.1237322e-06
        %v655 = vadd.f32 %v654, 0.00028619796
        %v656 = vmul.f32 %v653, %v655
        %v657 = vadd.f32 %v656, 0.0036580483
        %v658 = vmul.f32 %v653, %v657
        %v659 = vadd.f32 %v658, 0.05243302
        %v660 = vmul.f32 %v653, %v659
        %v661 = vadd.f32 %v660, 0.18741608
        %v662 = vmul.f32 %v653, %v661
        %v663 = vadd.f32 %v662, 1.1283791
        %v664 = vmul.f32 %v449, %v663
        %v665 = vmul.f32 %v653, 3.8918573e-05
        %v666 = vadd.f32 %v665, 0.001143296
        %v667 = vmul.f32 %v653, %v666
        %v668 = vadd.f32 %v667, 0.014752088
        %v669 = vmul.f32 %v653, %v668
        %v670 = vadd.f32 %v669, 0.112945676
        %v671 = vmul.f32 %v653, %v670
        %v672 = vadd.f32 %v671, 0.4994258
        %v673 = vmul.f32 %v653, %v672
        %v674 = vadd.f32 %v673, 1.0
        %v675 = vrcp.pop %v674
        %v676 = vmul.f32 %v674, %v675
        %v677 = vsub.f32 1.0, %v676
        %v678 = vmul.f32 %v675, %v677
        %v679 = vadd.f32 %v675, %v678
        %vm680 = vweird.f32 %v674
        %vm681 = vweird.f32 %v675
        %vm682 = vmor %vm680, %vm681
        %v683 = vsel %vm682, %v675, %v679
        %v684 = vand.u32 2147483647, %v674
        %vm685 = vcmp.eq.f32.partialorder %v684, 8.507059e+37
        %v686 = vand.u32 %v674, 2147483648
        %v687 = vor.u32 1.1754944e-38, %v686
        %v688 = vsel %vm685, %v687, %v683
        %v689 = vmul.f32 %v664, %v688
        %v690 = vmin.f32 %v689, 1.0
        %v691 = vmax.f32 %v690, -1.0
        %v692 = vmul.f32 %v450, %v450
        %v693 = vmin.f32 16.0, %v692
        %v694 = vmul.f32 %v693, 2.1237322e-06
        %v695 = vadd.f32 %v694, 0.00028619796
        %v696 = vmul.f32 %v693, %v695
        %v697 = vadd.f32 %v696, 0.0036580483
        %v698 = vmul.f32 %v693, %v697
        %v699 = vadd.f32 %v698, 0.05243302
        %v700 = vmul.f32 %v693, %v699
        %v701 = vadd.f32 %v700, 0.18741608
        %v702 = vmul.f32 %v693, %v701
        %v703 = vadd.f32 %v702, 1.1283791
        %v704 = vmul.f32 %v450, %v703
        %v705 = vmul.f32 %v693, 3.8918573e-05
        %v706 = vadd.f32 %v705, 0.001143296
        %v707 = vmul.f32 %v693, %v706
        %v708 = vadd.f32 %v707, 0.014752088
        %v709 = vmul.f32 %v693, %v708
        %v710 = vadd.f32 %v709, 0.112945676
        %v711 = vmul.f32 %v693, %v710
        %v712 = vadd.f32 %v711, 0.4994258
        %v713 = vmul.f32 %v693, %v712
        %v714 = vadd.f32 %v713, 1.0
        %v715 = vrcp.pop %v714
        %v716 = vmul.f32 %v714, %v715
        %v717 = vsub.f32 1.0, %v716
        %v718 = vmul.f32 %v715, %v717
        %v719 = vadd.f32 %v715, %v718
        %vm720 = vweird.f32 %v714
        %vm721 = vweird.f32 %v715
        %vm722 = vmor %vm720, %vm721
        %v723 = vsel %vm722, %v715, %v719
        %v724 = vand.u32 2147483647, %v714
        %vm725 = vcmp.eq.f32.partialorder %v724, 8.507059e+37
        %v726 = vand.u32 %v714, 2147483648
        %v727 = vor.u32 1.1754944e-38, %v726
        %v728 = vsel %vm725, %v727, %v723
        %v729 = vmul.f32 %v704, %v728
        %v730 = vmin.f32 %v729, 1.0
        %v731 = vmax.f32 %v730, -1.0
        %v732 = vmul.f32 %v451, %v451
        %v733 = vmin.f32 16.0, %v732
        %v734 = vmul.f32 %v733, 2.1237322e-06
        %v735 = vadd.f32 %v734, 0.00028619796
        %v736 = vmul.f32 %v733, %v735
        %v737 = vadd.f32 %v736, 0.0036580483
        %v738 = vmul.f32 %v733, %v737
        %v739 = vadd.f32 %v738, 0.05243302
        %v740 = vmul.f32 %v733, %v739
        %v741 = vadd.f32 %v740, 0.18741608
        %v742 = vmul.f32 %v733, %v741
        %v743 = vadd.f32 %v742, 1.1283791
        %v744 = vmul.f32 %v451, %v743
        %v745 = vmul.f32 %v733, 3.8918573e-05
        %v746 = vadd.f32 %v745, 0.001143296
        %v747 = vmul.f32 %v733, %v746
        %v748 = vadd.f32 %v747, 0.014752088
        %v749 = vmul.f32 %v733, %v748
        %v750 = vadd.f32 %v749, 0.112945676
        %v751 = vmul.f32 %v733, %v750
        %v752 = vadd.f32 %v751, 0.4994258
        %v753 = vmul.f32 %v733, %v752
        %v754 = vadd.f32 %v753, 1.0
        %v755 = vrcp.pop %v754
        %v756 = vmul.f32 %v754, %v755
        %v757 = vsub.f32 1.0, %v756
        %v758 = vmul.f32 %v755, %v757
        %v759 = vadd.f32 %v755, %v758
        %vm760 = vweird.f32 %v754
        %vm761 = vweird.f32 %v755
        %vm762 = vmor %vm760, %vm761
        %v763 = vsel %vm762, %v755, %v759
        %v764 = vand.u32 2147483647, %v754
        %vm765 = vcmp.eq.f32.partialorder %v764, 8.507059e+37
        %v766 = vand.u32 %v754, 2147483648
        %v767 = vor.u32 1.1754944e-38, %v766
        %v768 = vsel %vm765, %v767, %v763
        %v769 = vmul.f32 %v744, %v768
        %v770 = vmin.f32 %v769, 1.0
        %v771 = vmax.f32 %v770, -1.0
        %v772 = vadd.f32 %v491, 1.0
        %v773 = vadd.f32 %v531, 1.0
        %v774 = vadd.f32 %v571, 1.0
        %v775 = vadd.f32 %v611, 1.0
        %v776 = vadd.f32 %v651, 1.0
        %v777 = vadd.f32 %v691, 1.0
        %v778 = vadd.f32 %v731, 1.0
        %v779 = vadd.f32 %v771, 1.0
        %v780 = vmul.f32 %v436, %v772
        %v781 = vmul.f32 %v437, %v773
        %v782 = vmul.f32 %v438, %v774
        %v783 = vmul.f32 %v439, %v775
        %v784 = vmul.f32 %v440, %v776
        %v785 = vmul.f32 %v441, %v777
        %v786 = vmul.f32 %v442, %v778
        %v787 = vmul.f32 %v443, %v779
        %v788 = vld [vmem:[#allocation2] sm:$0xff]
        %v789 = vld [vmem:[%s320] sm:$0xf]
        %vm790 = vcmask 261120
        %v792 = vsel %vm790, %v789, 0
        %794 = vmatpush.msra.mxu0 0.0
        %795 = vmatpush.msra.mxu0 0.0
        %796 = vmatpush.msra.mxu0 0.0
        %797 = vmatpush.msra.mxu0 0.0
        %798 = vmatpush.msra.mxu0 0.0
        %799 = vmatpush.msra.mxu0 0.0
        %800 = vmatpush.msra.mxu0 0.0
        %801 = vmatpush.msra.mxu0 0.0
        %802 = vmatpush.msra.mxu0 0.0
        %803 = vmatpush.msra.mxu0 0.0
        %804 = vmatpush.msra.mxu0 0.0
        %805 = vmatpush.msra.mxu0 0.0
        %806 = vmatpush.msra.mxu0 %v786
        %807 = vmatpush.msra.mxu0 %v784
        %808 = vmatpush.msra.mxu0 %v782
        %809 = vmatpush.msra.mxu0 %v780
        %810 = vmatmul.f32.gmra.mxu0 %v792
        %v811 = vpop.f32.mrf.mxu0
        %v812 = vadd.f32 0.0, %v811
        %813 = vdwg.mxu0
        %814 = vmatpush.msra.mxu0 0.0
        %815 = vmatpush.msra.mxu0 0.0
        %816 = vmatpush.msra.mxu0 0.0
        %817 = vmatpush.msra.mxu0 0.0
        %818 = vmatpush.msra.mxu0 0.0
        %819 = vmatpush.msra.mxu0 0.0
        %820 = vmatpush.msra.mxu0 0.0
        %821 = vmatpush.msra.mxu0 0.0
        %822 = vmatpush.msra.mxu0 0.0
        %823 = vmatpush.msra.mxu0 0.0
        %824 = vmatpush.msra.mxu0 0.0
        %825 = vmatpush.msra.mxu0 0.0
        %826 = vmatpush.msra.mxu0 %v787
        %827 = vmatpush.msra.mxu0 %v785
        %828 = vmatpush.msra.mxu0 %v783
        %829 = vmatpush.msra.mxu0 %v781
        %830 = vmatmul.f32.gmra.mxu0 %v792
        %v831 = vpop.f32.mrf.mxu0
        %v832 = vadd.f32 0.0, %v831
        %833 = vdwg.mxu0
        %v836 = vrot.slane %v832, 4
        %v837 = vsel %vm373, %v812, %v836
        %v839 = vadd.f32 %v788, %v837
        %840 = vst [vmem:[#allocation2] sm:$0xff] %v839
        // Predicated region
        $region45: #{tpu_custom_call.1} parent=39 // pred_check
          %p841 = pneg %p322
        $region46: #{tpu_custom_call.1} parent=39 // pred_check_branch
          %843 = sbr.rel (%p841) target = $region48
        $region47: #{tpu_custom_call.1} parent=39 // pred_region
          %v844 = vld [vmem:[#allocation2] sm:$0xff]
          %v845 = vld [vmem:[%s4] sm:$0xf]
          %847 = vset.pattern.permute.xlu0 0
          %848 = vperm.xlu0 %847, %v845
          %v849 = vpop.permute.xlu0 %848
          %v851 = vunpack.c.l.s4 839922192
          %v852 = vunpack.c.0.s8 %v851
          %v853 = vperm.slane %v849, %v852
          %v855 = vadd.f32 %v844, %v853
          %856 = vst [vmem:[%s294] sm:$0xff] %v855
        $region48: #{tpu_custom_call.1} parent=39 // pred_fallthru
          _
        %s857 = sand.u32 %s175, 1
        %s858 = scalar_lea.sflag [#allocation4], %s857
        %s859 = sand.u32 %s175, 1
        %s860 = smul.addr %s859, 8
        %s861 = scalar_lea.vmem [#allocation3], %s860
        // Predicated region
        $region49: #{tpu_custom_call.1} parent=39 // pred_check
          %p862 = pneg %p185
        $region50: #{tpu_custom_call.1} parent=39 // pred_check_branch
          %864 = sbr.rel (%p862) target = $region52
        $region51: #{tpu_custom_call.1} parent=39 // pred_region
          %s865 = smul.u32 2, %s25
          %867 = vsyncadd %s858, 0
          %s868 = smul.addr %s24, 2
          %s869 = sadd.s32 %s865, %s868
          %s870 = smul.addr %s869, 4
          %s871 = scalar_lea.hbm %s5, %s870
          %s873 = sshll.u32 %s861, 4
          %s874 = int_to_ptr.vmem [resolvable:$true] %s873
          %s875 = sshll.u32 %s871, 4
          %s876 = int_to_ptr.hbm [resolvable:$true] %s875
          %878 = dma.vmem_to_hbm [thread:$0]  %s874, 128, %s876, %s858
        $region52: #{tpu_custom_call.1} parent=39 // pred_fallthru
          _
      $region40: #{tpu_custom_call.1} parent=5 // pred_fallthru
        _
      %p879 = scmp.le.s32.totalorder 2, %s14
      // Predicated region
      $region53: #{tpu_custom_call.1} parent=5 // pred_check
        %p880 = pneg %p879
      $region54: #{tpu_custom_call.1} parent=5 // pred_check_branch
        %882 = sbr.rel (%p880) target = $region56
      $region55: #{tpu_custom_call.1} parent=5 // pred_region
        %s883 = ssub.s32 %s14, 2
        // Predicated region
        $region57: #{tpu_custom_call.1} parent=55 // pred_check
          %p884 = pneg %p191
        $region58: #{tpu_custom_call.1} parent=55 // pred_check_branch
          %886 = sbr.rel (%p884) target = $region60
        $region59: #{tpu_custom_call.1} parent=55 // pred_region
          %s887 = sand.u32 %s176, 1
          %s888 = scalar_lea.sflag [#allocation4], %s887
          %s889 = sand.u32 %s176, 1
          %s890 = smul.addr %s889, 8
          %s891 = scalar_lea.vmem [#allocation3], %s890
          %893 = dma.done %s888, 128
        $region60: #{tpu_custom_call.1} parent=55 // pred_fallthru
          _
      $region56: #{tpu_custom_call.1} parent=5 // pred_fallthru
        _
    $region6: #{tpu_custom_call.1} parent=1 // loop_footer
      %s18 = sadd.s32 1, %s14
    $region7: #{tpu_custom_call.1} parent=1 // loop_footer_branch
      %13 = sbr.rel target = $region3
    $region8: #{tpu_custom_call.1} parent=1 // loop_exit
      _
    %894 = vsyncpa [#allocation4], 1
    %s895 = scalar_lea.sflag [#allocation4], 1
    %896 = vsyncpa %s895, 1

</llo_original>
